<compile_context>
chip_gen: v5e
topology: v5e:2x2
jax: 0.10.0
libtpu: 0.0.40
codegen_flags: <defaults>
</compile_context>

<pallas_src>
import functools
import math

import jax
import jax.numpy as jnp
from jax import lax
from jax.experimental import pallas as pl
from jax.experimental.pallas import tpu as pltpu

_LANE = 128
_INV_314 = 1.0 / 3.14  # constant reciprocal: fmod(x, 3.14) without a divide


def _hash_from_dt(dt):
    """frac(sin(fmod(dt, 3.14)) * 43758.545), divide-free."""
    sn = dt - jnp.trunc(dt * _INV_314) * 3.14  # torch.fmod (trunc remainder)
    s = jnp.sin(sn) * 43758.545
    return s - jnp.trunc(s)                    # torch.frac


def _noise_kernel(inv_scale_ref, o_ref, *, H, W, TR):
    # Lane-dense flat index: each (TR, 128) block covers TR*128 consecutive
    # pixels of the row-major [H, W] image.
    row0 = pl.program_id(0) * TR
    r = lax.broadcasted_iota(jnp.int32, (TR, _LANE), 0) + row0
    l = lax.broadcasted_iota(jnp.int32, (TR, _LANE), 1)
    flat = r * _LANE + l

    if (W & (W - 1)) == 0:
        # Power-of-two width: exact shift/mask decomposition.
        log2w = W.bit_length() - 1
        iy_i = lax.shift_right_logical(flat, log2w)
        ix_i = lax.bitwise_and(flat, W - 1)
    else:
        # General width: float reciprocal + off-by-one correction.
        # TODO(synk): exact only while flat < 2^24 (images up to ~16M pixels).
        iy_i = jnp.floor(flat.astype(jnp.float32) * (1.0 / W)).astype(jnp.int32)
        ix_i = flat - iy_i * W
        hi = ix_i >= W
        lo = ix_i < 0
        iy_i = iy_i + hi.astype(jnp.int32) - lo.astype(jnp.int32)
        ix_i = ix_i - jnp.where(hi, W, 0) + jnp.where(lo, W, 0)

    # original_pos = get_p_start() * tex_size()  -> pixel indices (x=col, y=row)
    opx = ix_i.astype(jnp.float32)
    opy = iy_i.astype(jnp.float32)

    inv_scale = inv_scale_ref[0, 0]  # 1 / (noise_scale * input_size_factor)

    posx = (opx + 711.0) * inv_scale
    posy = (opy + 911.0) * inv_scale

    npx = jnp.floor(posx)
    npy = jnp.floor(posy)
    rx = posx - npx
    ry = posy - npy

    # Hoisted dot product for the four lattice corners.
    dt00 = npx * 12.9898 + npy * 78.233
    n = _hash_from_dt(dt00)
    nr = _hash_from_dt(dt00 + 12.9898)
    nd = _hash_from_dt(dt00 + 78.233)
    nrd = _hash_from_dt(dt00 + (12.9898 + 78.233))

    # torch.lerp(a, b, w) = a + w * (b - a)
    h1 = n + rx * (nr - n)
    h2 = nd + rx * (nrd - nd)
    v = h1 + ry * (h2 - h1)

    border = (
        (v >= 0.5)
        | (opx < 1.0)
        | (opy < 1.0)
        | (opx >= float(W) - 1.0)
        | (opy >= float(H) - 1.0)
    )
    v = jnp.where(border, jnp.float32(1.0), jnp.float32(0.0))
    v = v + 2.0 * _hash_from_dt(posx * 12.9898 + posy * 78.233)

    o_ref[...] = v


def noise_effect(noise_shape_texture, noise_scale):
    """Pallas equivalent of NoiseEffect.forward.

    noise_shape_texture: [N, C, H, W] (values unused, shape only)
    noise_scale: scalar
    returns: [N, 1, H, W] float32 (identical map for every batch index,
             matching the reference semantics)
    """
    N, _, H, W = noise_shape_texture.shape
    HW = H * W
    input_size_factor = math.sqrt(HW) / 1024.0

    # Single scalar divide in the wrapper; the kernel only multiplies.
    # (noise_scale == 0 -> inf/NaN, same as the PyTorch reference.)
    inv_scale = (
        1.0 / (jnp.asarray(noise_scale, jnp.float32) * input_size_factor)
    ).reshape(1, 1)

    # Lane-dense flat layout: ceil(HW / 128) rows of 128 lanes, padded so the
    # row count divides into (TR, 128) tiles with TR a multiple of 8.
    R = pl.cdiv(HW, _LANE)
    R8 = ((R + 7) // 8) * 8
    TR = min(256, R8)                  # <= 128 KiB output block per grid step
    num_tiles = pl.cdiv(R8, TR)
    R_pad = num_tiles * TR

    kernel = functools.partial(_noise_kernel, H=H, W=W, TR=TR)

    flat_out = pl.pallas_call(
        kernel,
        out_shape=jax.ShapeDtypeStruct((R_pad, _LANE), jnp.float32),
        grid_spec=pltpu.PrefetchScalarGridSpec(
            num_scalar_prefetch=0,
            grid=(num_tiles,),
            in_specs=[pl.BlockSpec(memory_space=pltpu.MemorySpace.SMEM)],
            out_specs=pl.BlockSpec((TR, _LANE), lambda h: (h, 0)),
        ),
        compiler_params=pltpu.CompilerParams(
            dimension_semantics=("parallel",)),
    )(inv_scale)

    # Drop padding, restore [H, W], and broadcast over the batch dim (the map
    # has no dependence on n).
    v = flat_out.reshape(-1)[:HW].reshape(1, 1, H, W)
    return jnp.broadcast_to(v, (N, 1, H, W))


if __name__ == "__main__":
    key = jax.random.PRNGKey(0)
    N, C, H, W = 2, 4, 16, 16
    # noise_shape_texture only provides the output shape (NCHW).
    noise_shape_texture = jax.random.normal(key, (N, C, H, W), dtype=jnp.float32)
    noise_scale = jnp.float32(10.0)

    out = noise_effect(noise_shape_texture, noise_scale)
    out = jax.block_until_ready(out)

    assert out.shape == (N, 1, H, W), out.shape
    assert out.dtype == jnp.float32, out.dtype
    assert bool(jnp.all(jnp.isfinite(out)))
    print("KERNEL_OK")
</pallas_src>

<mosaic_0001>
module attributes {stable_mosaic.version = 11 : i64} {
  func.func @_noise_kernel(%arg0: i32, %arg1: memref<1x1xf32, #tpu.memory_space<smem>>, %arg2: memref<8x128xf32, #tpu.memory_space<vmem>>) attributes {dimension_semantics = [#tpu.dimension_semantics<parallel>], iteration_bounds = array<i64: 1>, scalar_prefetch = 0 : i64, scratch_operands = 0 : i64, tpu.core_type = #tpu.core_type<tc>, window_params = [{transform_indices = @transform_0, window_bounds = array<i64: 1, 1>}, {transform_indices = @transform_1, window_bounds = array<i64: 8, 128>}]} {
    %c8_i32 = arith.constant 8 : i32
    %0 = arith.muli %arg0, %c8_i32 : i32
    %1 = tpu.iota {dimensions = array<i32: 0>} : vector<8x128xi32>
    %2 = vector.broadcast %0 : i32 to vector<8x128xi32>
    %3 = arith.addi %1, %2 : vector<8x128xi32>
    %4 = tpu.iota {dimensions = array<i32: 1>} : vector<8x128xi32>
    %c128_i32 = arith.constant 128 : i32
    %5 = vector.broadcast %c128_i32 : i32 to vector<8x128xi32>
    %6 = arith.muli %3, %5 : vector<8x128xi32>
    %7 = arith.addi %6, %4 : vector<8x128xi32>
    %c4_i32 = arith.constant 4 : i32
    %8 = vector.broadcast %c4_i32 : i32 to vector<8x128xi32>
    %9 = arith.shrui %7, %8 : vector<8x128xi32>
    %c15_i32 = arith.constant 15 : i32
    %10 = vector.broadcast %c15_i32 : i32 to vector<8x128xi32>
    %11 = arith.andi %7, %10 : vector<8x128xi32>
    %12 = arith.sitofp %11 : vector<8x128xi32> to vector<8x128xf32>
    %13 = arith.sitofp %9 : vector<8x128xi32> to vector<8x128xf32>
    %c0 = arith.constant 0 : index
    %c0_0 = arith.constant 0 : index
    %14 = memref.load %arg1[%c0, %c0_0] : memref<1x1xf32, #tpu.memory_space<smem>>
    %cst = arith.constant 7.110000e+02 : f32
    %15 = vector.broadcast %cst : f32 to vector<8x128xf32>
    %16 = arith.addf %12, %15 : vector<8x128xf32>
    %17 = vector.broadcast %14 : f32 to vector<8x128xf32>
    %18 = arith.mulf %16, %17 : vector<8x128xf32>
    %cst_1 = arith.constant 9.110000e+02 : f32
    %19 = vector.broadcast %cst_1 : f32 to vector<8x128xf32>
    %20 = arith.addf %13, %19 : vector<8x128xf32>
    %21 = vector.broadcast %14 : f32 to vector<8x128xf32>
    %22 = arith.mulf %20, %21 : vector<8x128xf32>
    %23 = math.floor %18 : vector<8x128xf32>
    %24 = math.floor %22 : vector<8x128xf32>
    %25 = arith.subf %18, %23 : vector<8x128xf32>
    %26 = arith.subf %22, %24 : vector<8x128xf32>
    %cst_2 = arith.constant 1.298980e+01 : f32
    %27 = vector.broadcast %cst_2 : f32 to vector<8x128xf32>
    %28 = arith.mulf %23, %27 : vector<8x128xf32>
    %cst_3 = arith.constant 7.823300e+01 : f32
    %29 = vector.broadcast %cst_3 : f32 to vector<8x128xf32>
    %30 = arith.mulf %24, %29 : vector<8x128xf32>
    %31 = arith.addf %28, %30 : vector<8x128xf32>
    %cst_4 = arith.constant 0.318471342 : f32
    %32 = vector.broadcast %cst_4 : f32 to vector<8x128xf32>
    %33 = arith.mulf %31, %32 : vector<8x128xf32>
    %cst_5 = arith.constant 0.000000e+00 : f32
    %34 = vector.broadcast %cst_5 : f32 to vector<8x128xf32>
    %35 = arith.cmpf olt, %33, %34 : vector<8x128xf32>
    %36 = math.ceil %33 : vector<8x128xf32>
    %37 = math.floor %33 : vector<8x128xf32>
    %38 = arith.select %35, %36, %37 : vector<8x128xi1>, vector<8x128xf32>
    %cst_6 = arith.constant 3.140000e+00 : f32
    %39 = vector.broadcast %cst_6 : f32 to vector<8x128xf32>
    %40 = arith.mulf %38, %39 : vector<8x128xf32>
    %41 = arith.subf %31, %40 : vector<8x128xf32>
    %42 = math.sin %41 : vector<8x128xf32>
    %cst_7 = arith.constant 43758.5469 : f32
    %43 = vector.broadcast %cst_7 : f32 to vector<8x128xf32>
    %44 = arith.mulf %42, %43 : vector<8x128xf32>
    %cst_8 = arith.constant 0.000000e+00 : f32
    %45 = vector.broadcast %cst_8 : f32 to vector<8x128xf32>
    %46 = arith.cmpf olt, %44, %45 : vector<8x128xf32>
    %47 = math.ceil %44 : vector<8x128xf32>
    %48 = math.floor %44 : vector<8x128xf32>
    %49 = arith.select %46, %47, %48 : vector<8x128xi1>, vector<8x128xf32>
    %50 = arith.subf %44, %49 : vector<8x128xf32>
    %cst_9 = arith.constant 1.298980e+01 : f32
    %51 = vector.broadcast %cst_9 : f32 to vector<8x128xf32>
    %52 = arith.addf %31, %51 : vector<8x128xf32>
    %cst_10 = arith.constant 0.318471342 : f32
    %53 = vector.broadcast %cst_10 : f32 to vector<8x128xf32>
    %54 = arith.mulf %52, %53 : vector<8x128xf32>
    %cst_11 = arith.constant 0.000000e+00 : f32
    %55 = vector.broadcast %cst_11 : f32 to vector<8x128xf32>
    %56 = arith.cmpf olt, %54, %55 : vector<8x128xf32>
    %57 = math.ceil %54 : vector<8x128xf32>
    %58 = math.floor %54 : vector<8x128xf32>
    %59 = arith.select %56, %57, %58 : vector<8x128xi1>, vector<8x128xf32>
    %cst_12 = arith.constant 3.140000e+00 : f32
    %60 = vector.broadcast %cst_12 : f32 to vector<8x128xf32>
    %61 = arith.mulf %59, %60 : vector<8x128xf32>
    %62 = arith.subf %52, %61 : vector<8x128xf32>
    %63 = math.sin %62 : vector<8x128xf32>
    %cst_13 = arith.constant 43758.5469 : f32
    %64 = vector.broadcast %cst_13 : f32 to vector<8x128xf32>
    %65 = arith.mulf %63, %64 : vector<8x128xf32>
    %cst_14 = arith.constant 0.000000e+00 : f32
    %66 = vector.broadcast %cst_14 : f32 to vector<8x128xf32>
    %67 = arith.cmpf olt, %65, %66 : vector<8x128xf32>
    %68 = math.ceil %65 : vector<8x128xf32>
    %69 = math.floor %65 : vector<8x128xf32>
    %70 = arith.select %67, %68, %69 : vector<8x128xi1>, vector<8x128xf32>
    %71 = arith.subf %65, %70 : vector<8x128xf32>
    %cst_15 = arith.constant 7.823300e+01 : f32
    %72 = vector.broadcast %cst_15 : f32 to vector<8x128xf32>
    %73 = arith.addf %31, %72 : vector<8x128xf32>
    %cst_16 = arith.constant 0.318471342 : f32
    %74 = vector.broadcast %cst_16 : f32 to vector<8x128xf32>
    %75 = arith.mulf %73, %74 : vector<8x128xf32>
    %cst_17 = arith.constant 0.000000e+00 : f32
    %76 = vector.broadcast %cst_17 : f32 to vector<8x128xf32>
    %77 = arith.cmpf olt, %75, %76 : vector<8x128xf32>
    %78 = math.ceil %75 : vector<8x128xf32>
    %79 = math.floor %75 : vector<8x128xf32>
    %80 = arith.select %77, %78, %79 : vector<8x128xi1>, vector<8x128xf32>
    %cst_18 = arith.constant 3.140000e+00 : f32
    %81 = vector.broadcast %cst_18 : f32 to vector<8x128xf32>
    %82 = arith.mulf %80, %81 : vector<8x128xf32>
    %83 = arith.subf %73, %82 : vector<8x128xf32>
    %84 = math.sin %83 : vector<8x128xf32>
    %cst_19 = arith.constant 43758.5469 : f32
    %85 = vector.broadcast %cst_19 : f32 to vector<8x128xf32>
    %86 = arith.mulf %84, %85 : vector<8x128xf32>
    %cst_20 = arith.constant 0.000000e+00 : f32
    %87 = vector.broadcast %cst_20 : f32 to vector<8x128xf32>
    %88 = arith.cmpf olt, %86, %87 : vector<8x128xf32>
    %89 = math.ceil %86 : vector<8x128xf32>
    %90 = math.floor %86 : vector<8x128xf32>
    %91 = arith.select %88, %89, %90 : vector<8x128xi1>, vector<8x128xf32>
    %92 = arith.subf %86, %91 : vector<8x128xf32>
    %cst_21 = arith.constant 9.122280e+01 : f32
    %93 = vector.broadcast %cst_21 : f32 to vector<8x128xf32>
    %94 = arith.addf %31, %93 : vector<8x128xf32>
    %cst_22 = arith.constant 0.318471342 : f32
    %95 = vector.broadcast %cst_22 : f32 to vector<8x128xf32>
    %96 = arith.mulf %94, %95 : vector<8x128xf32>
    %cst_23 = arith.constant 0.000000e+00 : f32
    %97 = vector.broadcast %cst_23 : f32 to vector<8x128xf32>
    %98 = arith.cmpf olt, %96, %97 : vector<8x128xf32>
    %99 = math.ceil %96 : vector<8x128xf32>
    %100 = math.floor %96 : vector<8x128xf32>
    %101 = arith.select %98, %99, %100 : vector<8x128xi1>, vector<8x128xf32>
    %cst_24 = arith.constant 3.140000e+00 : f32
    %102 = vector.broadcast %cst_24 : f32 to vector<8x128xf32>
    %103 = arith.mulf %101, %102 : vector<8x128xf32>
    %104 = arith.subf %94, %103 : vector<8x128xf32>
    %105 = math.sin %104 : vector<8x128xf32>
    %cst_25 = arith.constant 43758.5469 : f32
    %106 = vector.broadcast %cst_25 : f32 to vector<8x128xf32>
    %107 = arith.mulf %105, %106 : vector<8x128xf32>
    %cst_26 = arith.constant 0.000000e+00 : f32
    %108 = vector.broadcast %cst_26 : f32 to vector<8x128xf32>
    %109 = arith.cmpf olt, %107, %108 : vector<8x128xf32>
    %110 = math.ceil %107 : vector<8x128xf32>
    %111 = math.floor %107 : vector<8x128xf32>
    %112 = arith.select %109, %110, %111 : vector<8x128xi1>, vector<8x128xf32>
    %113 = arith.subf %107, %112 : vector<8x128xf32>
    %114 = arith.subf %71, %50 : vector<8x128xf32>
    %115 = arith.mulf %25, %114 : vector<8x128xf32>
    %116 = arith.addf %50, %115 : vector<8x128xf32>
    %117 = arith.subf %113, %92 : vector<8x128xf32>
    %118 = arith.mulf %25, %117 : vector<8x128xf32>
    %119 = arith.addf %92, %118 : vector<8x128xf32>
    %120 = arith.subf %119, %116 : vector<8x128xf32>
    %121 = arith.mulf %26, %120 : vector<8x128xf32>
    %122 = arith.addf %116, %121 : vector<8x128xf32>
    %cst_27 = arith.constant 5.000000e-01 : f32
    %123 = vector.broadcast %cst_27 : f32 to vector<8x128xf32>
    %124 = arith.cmpf oge, %122, %123 : vector<8x128xf32>
    %cst_28 = arith.constant 1.000000e+00 : f32
    %125 = vector.broadcast %cst_28 : f32 to vector<8x128xf32>
    %126 = arith.cmpf olt, %12, %125 : vector<8x128xf32>
    %127 = arith.ori %124, %126 : vector<8x128xi1>
    %cst_29 = arith.constant 1.000000e+00 : f32
    %128 = vector.broadcast %cst_29 : f32 to vector<8x128xf32>
    %129 = arith.cmpf olt, %13, %128 : vector<8x128xf32>
    %130 = arith.ori %127, %129 : vector<8x128xi1>
    %cst_30 = arith.constant 1.500000e+01 : f32
    %131 = vector.broadcast %cst_30 : f32 to vector<8x128xf32>
    %132 = arith.cmpf oge, %12, %131 : vector<8x128xf32>
    %133 = arith.ori %130, %132 : vector<8x128xi1>
    %cst_31 = arith.constant 1.500000e+01 : f32
    %134 = vector.broadcast %cst_31 : f32 to vector<8x128xf32>
    %135 = arith.cmpf oge, %13, %134 : vector<8x128xf32>
    %136 = arith.ori %133, %135 : vector<8x128xi1>
    %cst_32 = arith.constant 1.000000e+00 : f32
    %cst_33 = arith.constant 0.000000e+00 : f32
    %137 = vector.broadcast %cst_32 : f32 to vector<8x128xf32>
    %138 = vector.broadcast %cst_33 : f32 to vector<8x128xf32>
    %139 = arith.select %136, %137, %138 : vector<8x128xi1>, vector<8x128xf32>
    %cst_34 = arith.constant 1.298980e+01 : f32
    %140 = vector.broadcast %cst_34 : f32 to vector<8x128xf32>
    %141 = arith.mulf %18, %140 : vector<8x128xf32>
    %cst_35 = arith.constant 7.823300e+01 : f32
    %142 = vector.broadcast %cst_35 : f32 to vector<8x128xf32>
    %143 = arith.mulf %22, %142 : vector<8x128xf32>
    %144 = arith.addf %141, %143 : vector<8x128xf32>
    %cst_36 = arith.constant 0.318471342 : f32
    %145 = vector.broadcast %cst_36 : f32 to vector<8x128xf32>
    %146 = arith.mulf %144, %145 : vector<8x128xf32>
    %cst_37 = arith.constant 0.000000e+00 : f32
    %147 = vector.broadcast %cst_37 : f32 to vector<8x128xf32>
    %148 = arith.cmpf olt, %146, %147 : vector<8x128xf32>
    %149 = math.ceil %146 : vector<8x128xf32>
    %150 = math.floor %146 : vector<8x128xf32>
    %151 = arith.select %148, %149, %150 : vector<8x128xi1>, vector<8x128xf32>
    %cst_38 = arith.constant 3.140000e+00 : f32
    %152 = vector.broadcast %cst_38 : f32 to vector<8x128xf32>
    %153 = arith.mulf %151, %152 : vector<8x128xf32>
    %154 = arith.subf %144, %153 : vector<8x128xf32>
    %155 = math.sin %154 : vector<8x128xf32>
    %cst_39 = arith.constant 43758.5469 : f32
    %156 = vector.broadcast %cst_39 : f32 to vector<8x128xf32>
    %157 = arith.mulf %155, %156 : vector<8x128xf32>
    %cst_40 = arith.constant 0.000000e+00 : f32
    %158 = vector.broadcast %cst_40 : f32 to vector<8x128xf32>
    %159 = arith.cmpf olt, %157, %158 : vector<8x128xf32>
    %160 = math.ceil %157 : vector<8x128xf32>
    %161 = math.floor %157 : vector<8x128xf32>
    %162 = arith.select %159, %160, %161 : vector<8x128xi1>, vector<8x128xf32>
    %163 = arith.subf %157, %162 : vector<8x128xf32>
    %cst_41 = arith.constant 2.000000e+00 : f32
    %164 = vector.broadcast %cst_41 : f32 to vector<8x128xf32>
    %165 = arith.mulf %164, %163 : vector<8x128xf32>
    %166 = arith.addf %139, %165 : vector<8x128xf32>
    %c0_42 = arith.constant 0 : index
    %c0_43 = arith.constant 0 : index
    %167 = vector.load %arg2[%c0_42, %c0_43] : memref<8x128xf32, #tpu.memory_space<vmem>>, vector<8x128xf32>
    tpu.vector_store %arg2[%c0_42, %c0_43], %166 {strides = array<i32>} : memref<8x128xf32, #tpu.memory_space<vmem>>, vector<8x128xf32>,
    return
  }
  func.func @transform_0(%arg0: i32) -> (i32, i32) {
    %c0_i32 = arith.constant 0 : i32
    %c0_i32_0 = arith.constant 0 : i32
    %c0_i32_1 = arith.constant 0 : i32
    return %c0_i32, %c0_i32_0 : i32, i32
  }
  func.func @transform_1(%arg0: i32) -> (i32, i32) {
    %c0_i32 = arith.constant 0 : i32
    %c0_i32_0 = arith.constant 0 : i32
    return %arg0, %c0_i32 : i32, i32
  }
}

</mosaic_0001>

<llo_original>
// kernel: tpu_custom_call.1
$region0: #{tpu_custom_call.1}
  #allocation0 [shape = 'u32[]', space=smem, size = 0x4, offset = 0x4, fixed_abs, tag = 'smem constant byte address 0x4 - core index']
  #allocation1 [shape = 'u32[72,128]{1,0:T(1,128)}', space=vmem, size = 0x9000, scoped, tag = 'internal scratch']
  #allocation2 [shape = 'f32[1,1]{1,0:T(1,128)S(6)}', space=smem, size = 0x200, scoped, tag = 'scoped memory for tpu_custom_call.1']
  %s0 = inlined_call_operand.<no memory space> [shape: f32[1,1], index: 0, kind: input, shape index: {}]
  %s1 = inlined_call_operand.hbm [shape: f32[8,128], index: 1, kind: output, shape index: {}]
  %s2 = sld [smem:[#allocation0]]
  $region14: #{tpu_custom_call.1} parent=0
    _
  %s4 = ssub.s32 1, %s2
  %s5 = scalar_select 0, %s4, %s2
  %6 = sst [smem:[#allocation2]] %s0
  $region1: #{tpu_custom_call.1} parent=0
    #allocation3 [shape = 'u8[4096]{0}', space=vmem, size = 0x1000, scoped, tag = 'output window, operand 0, single buffered']
    #allocation4 [shape = 's32[1]{0}', space=sflag, size = 0x4, scoped, tag = 'scoped memory for tpu_custom_call.1']
    %7 = vsyncpa [#allocation4], 0
    // Predicated region
    $region2: #{tpu_custom_call.1} parent=1 // pred_check
      _
    $region3: #{tpu_custom_call.1} parent=1 // pred_check_branch
      %9 = sbr.rel (0) target = $region5
    $region4: #{tpu_custom_call.1} parent=1 // pred_region
      _
    $region5: #{tpu_custom_call.1} parent=1 // pred_fallthru
      _
    %s10 = smul.u32 0, 8
    %v11 = vlaneseq
    %v12 = vshrl.u32 %v11, 7
    %v13 = vstv %s10
    %v14 = vadd.s32 %v12, %v13
    %v15 = vlaneseq
    %v16 = vand.u32 %v15, 127
    %v17 = vmul.u32 %v14, 128
    %v18 = vadd.s32 %v17, %v16
    %v19 = vshrl.u32 %v18, 4
    %v20 = vand.u32 %v18, 15
    %v21 = vcvt.s32.f32 %v20
    %v22 = vcvt.s32.f32 %v19
    %s23 = sld [smem:[#allocation2]]
    %v24 = vadd.f32 %v21, 711.0
    %v25 = vstv %s23
    %v26 = vmul.f32 %v24, %v25
    %v27 = vadd.f32 %v22, 911.0
    %v28 = vmul.f32 %v27, %v25
    %v29 = vfloor.f32 %v26
    %v30 = vfloor.f32 %v28
    %v31 = vsub.f32 %v26, %v29
    %v32 = vsub.f32 %v28, %v30
    %v33 = vmul.f32 %v29, 12.9898
    %v34 = vmul.f32 %v30, 78.233
    %v35 = vadd.f32 %v33, %v34
    %v36 = vmul.f32 %v35, 0.31847134
    %vm37 = vcmp.lt.f32.partialorder %v36, 0.0
    %v38 = vceil.f32 %v36
    %v39 = vfloor.f32 %v36
    %v40 = vsel %vm37, %v38, %v39
    %v41 = vmul.f32 %v40, 3.14
    %v42 = vsub.f32 %v35, %v41
    %v43 = vand.u32 2147483647, %v42
    %vm44 = vcmp.le.f32.partialorder %v43, 0.7853982
    %vm45 = vcmp.lt.s32.totalorder %v42, 0
    %v46 = vand.u32 %v42, 2139095040
    %v47 = vshrl.u32 %v46, 23
    %v48 = vsub.s32 %v47, 127
    %v49 = vand.u32 2147483647, %v42
    %v50 = vand.u32 %v49, 8388607
    %v51 = vor.u32 %v50, 8388608
    %v52 = vsub.s32 0, %v51
    %v53 = vadd.s32 %v48, 1
    %vm54 = vcmp.gt.s32.totalorder %v53, 0
    %v55 = vsel %vm54, %v53, 0
    %v56 = vshrl.u32 %v55, 5
    %v57 = vand.u32 %v55, 31
    %v58 = vsub.s32 32, %v57
    %v59 = vshrl.u32 683565275, %v58
    %v60 = vshll.u32 683565275, %v57
    %v61 = vshrl.u32 2475754826, %v58
    %v62 = vor.u32 %v60, %v61
    %v63 = vshll.u32 2475754826, %v57
    %v64 = vshrl.u32 2131351028, %v58
    %v65 = vor.u32 %v63, %v64
    %v66 = vshll.u32 2131351028, %v57
    %v67 = vshrl.u32 2102212464, %v58
    %v68 = vor.u32 %v66, %v67
    %v69 = vshll.u32 2102212464, %v57
    %v70 = vshrl.u32 920167782, %v58
    %v71 = vor.u32 %v69, %v70
    %v72 = vshll.u32 920167782, %v57
    %v73 = vshrl.u32 1326507024, %v58
    %v74 = vor.u32 %v72, %v73
    %vm75 = vcmp.lt.s32.totalorder %v56, 1
    %vm76 = vcmp.lt.s32.totalorder %v56, 2
    %vm77 = vcmp.lt.s32.totalorder %v56, 3
    %vm78 = vcmp.lt.s32.totalorder %v56, 4
    %v79 = vsel %vm75, %v59, %v62
    %v80 = vsel %vm78, %v68, 2102212464
    %v81 = vsel %vm77, %v65, %v80
    %v82 = vsel %vm76, %v79, %v81
    %v83 = vsel %vm75, %v62, %v65
    %v84 = vsel %vm78, %v71, 920167782
    %v85 = vsel %vm77, %v68, %v84
    %v86 = vsel %vm76, %v83, %v85
    %v87 = vsel %vm75, %v65, %v68
    %v88 = vsel %vm78, %v74, 1326507024
    %v89 = vsel %vm77, %v71, %v88
    %v90 = vsel %vm76, %v87, %v89
    %v91 = vshll.u32 %v51, 8
    %v92 = vand.u32 %v91, 65535
    %v93 = vshrl.u32 %v91, 16
    %v94 = vand.u32 %v90, 65535
    %v95 = vshrl.u32 %v90, 16
    %v96 = vmul.u32 %v92, %v94
    %v97 = vmul.u32 %v92, %v95
    %v98 = vmul.u32 %v93, %v94
    %v99 = vmul.u32 %v93, %v95
    %v100 = vshll.u32 %v97, 16
    %v101 = vshrl.u32 %v97, 16
    %v102 = vshll.u32 %v98, 16
    %v103 = vshrl.u32 %v98, 16
    %vm104 = vc.u32 %v96, %v100
    %v105 = vsel %vm104, 1, 0
    %v106 = vadd.s32 %v96, %v100
    %v107 = vadd.s32 %v99, %v105
    %vm108 = vc.u32 %v106, %v102
    %v109 = vsel %vm108, 1, 0
    %v110 = vadd.s32 %v106, %v102
    %v111 = vadd.s32 %v107, %v109
    %v112 = vadd.s32 %v111, %v101
    %v113 = vadd.s32 %v112, %v103
    %v114 = vand.u32 %v91, 65535
    %v115 = vshrl.u32 %v91, 16
    %v116 = vand.u32 %v86, 65535
    %v117 = vshrl.u32 %v86, 16
    %v118 = vmul.u32 %v114, %v116
    %v119 = vmul.u32 %v114, %v117
    %v120 = vmul.u32 %v115, %v116
    %v121 = vmul.u32 %v115, %v117
    %v122 = vshll.u32 %v119, 16
    %v123 = vshrl.u32 %v119, 16
    %v124 = vshll.u32 %v120, 16
    %v125 = vshrl.u32 %v120, 16
    %vm126 = vc.u32 %v118, %v122
    %v127 = vsel %vm126, 1, 0
    %v128 = vadd.s32 %v118, %v122
    %v129 = vadd.s32 %v121, %v127
    %vm130 = vc.u32 %v128, %v124
    %v131 = vsel %vm130, 1, 0
    %v132 = vadd.s32 %v128, %v124
    %v133 = vadd.s32 %v129, %v131
    %v134 = vadd.s32 %v133, %v123
    %v135 = vadd.s32 %v134, %v125
    %v136 = vmul.u32 %v91, %v82
    %v137 = vadd.s32 %v113, %v132
    %vm138 = vc.u32 %v113, %v132
    %v139 = vadd.s32 %v135, 1
    %v140 = vsel %vm138, %v139, %v135
    %v141 = vadd.s32 %v136, %v140
    %v142 = vadd.s32 %v141, 536870912
    %v143 = vshrl.u32 %v142, 30
    %v144 = vshll.u32 %v143, 30
    %v145 = vsub.s32 %v141, %v144
    %vm146 = vcmp.lt.s32.totalorder %v145, 0
    %v147 = vsub.s32 0, %v145
    %v148 = vsel %vm146, %v147, %v145
    %v149 = vclz %v148
    %v150 = vsub.s32 %v149, 2
    %vm151 = vcmp.gt.s32.totalorder 0, %v150
    %v152 = vsel %vm151, 0, %v150
    %v153 = vsub.s32 32, %v152
    %v154 = vshll.u32 %v145, %v152
    %v155 = vshrl.u32 %v137, %v153
    %v156 = vor.u32 %v154, %v155
    %v157 = vsub.s32 4294967266, %v152
    %v158 = vadd.s32 %v157, 127
    %v159 = vshll.u32 %v158, 23
    %v160 = vor.u32 4788187, %v159
    %v161 = vand.u32 2147483647, %v160
    %v163 = vcvt.s32.f32 %v156
    %v164 = vmul.f32 %v163, %v161
    %v165 = vxor.u32 %v164, 2147483648
    %v166 = vsel %vm45, %v165, %v164
    %v167 = vsub.s32 4, %v143
    %v168 = vsel %vm45, %v167, %v143
    %v169 = vsel %vm44, %v42, %v166
    %v170 = vsel %vm44, 0, %v168
    %v171 = vmul.f32 %v169, %v169
    %v172 = vmul.f32 %v171, -0.001358992
    %v173 = vadd.f32 %v172, 0.041655596
    %v174 = vmul.f32 %v171, %v173
    %v175 = vadd.f32 %v174, -0.4999988
    %v176 = vmul.f32 %v171, %v175
    %v177 = vadd.f32 1.0, %v176
    %v178 = vmul.f32 %v169, %v169
    %v179 = vmul.f32 %v178, -0.00019511016
    %v180 = vadd.f32 %v179, 0.008332121
    %v181 = vmul.f32 %v178, %v180
    %v182 = vadd.f32 %v181, -0.16666654
    %v183 = vmul.f32 %v178, %v182
    %v184 = vadd.f32 %v183, 1.0
    %v185 = vmul.f32 %v184, %v169
    %vm186 = vweird.f32 %v42
    %v187 = vadd.s32 %v170, 3
    %v188 = vand.u32 %v187, 3
    %vm189 = vcmp.lt.s32.totalorder %v188, 2
    %vm190 = vcmp.eq.s32.totalorder %v188, 0
    %v191 = vxor.u32 %v185, 2147483648
    %v192 = vsel %vm190, %v177, %v191
    %vm193 = vcmp.eq.s32.totalorder %v188, 2
    %v194 = vxor.u32 %v177, 2147483648
    %v195 = vsel %vm193, %v194, %v185
    %v196 = vsel %vm189, %v192, %v195
    %v197 = vsel %vm186, nan, %v196
    %v198 = vmul.f32 %v197, 43758.547
    %vm199 = vcmp.lt.f32.partialorder %v198, 0.0
    %v200 = vceil.f32 %v198
    %v201 = vfloor.f32 %v198
    %v202 = vsel %vm199, %v200, %v201
    %v203 = vsub.f32 %v198, %v202
    %v204 = vadd.f32 %v35, 12.9898
    %v205 = vmul.f32 %v204, 0.31847134
    %vm206 = vcmp.lt.f32.partialorder %v205, 0.0
    %v207 = vceil.f32 %v205
    %v208 = vfloor.f32 %v205
    %v209 = vsel %vm206, %v207, %v208
    %v210 = vmul.f32 %v209, 3.14
    %v211 = vsub.f32 %v204, %v210
    %v212 = vand.u32 2147483647, %v211
    %vm213 = vcmp.le.f32.partialorder %v212, 0.7853982
    %vm214 = vcmp.lt.s32.totalorder %v211, 0
    %v215 = vand.u32 %v211, 2139095040
    %v216 = vshrl.u32 %v215, 23
    %v217 = vsub.s32 %v216, 127
    %v218 = vand.u32 2147483647, %v211
    %v219 = vand.u32 %v218, 8388607
    %v220 = vor.u32 %v219, 8388608
    %v221 = vsub.s32 0, %v220
    %v222 = vadd.s32 %v217, 1
    %vm223 = vcmp.gt.s32.totalorder %v222, 0
    %v224 = vsel %vm223, %v222, 0
    %v225 = vshrl.u32 %v224, 5
    %v226 = vand.u32 %v224, 31
    %v227 = vsub.s32 32, %v226
    %v228 = vshrl.u32 683565275, %v227
    %v229 = vshll.u32 683565275, %v226
    %v230 = vshrl.u32 2475754826, %v227
    %v231 = vor.u32 %v229, %v230
    %v232 = vshll.u32 2475754826, %v226
    %v233 = vshrl.u32 2131351028, %v227
    %v234 = vor.u32 %v232, %v233
    %v235 = vshll.u32 2131351028, %v226
    %v236 = vshrl.u32 2102212464, %v227
    %v237 = vor.u32 %v235, %v236
    %v238 = vshll.u32 2102212464, %v226
    %v239 = vshrl.u32 920167782, %v227
    %v240 = vor.u32 %v238, %v239
    %v241 = vshll.u32 920167782, %v226
    %v242 = vshrl.u32 1326507024, %v227
    %v243 = vor.u32 %v241, %v242
    %vm244 = vcmp.lt.s32.totalorder %v225, 1
    %vm245 = vcmp.lt.s32.totalorder %v225, 2
    %vm246 = vcmp.lt.s32.totalorder %v225, 3
    %vm247 = vcmp.lt.s32.totalorder %v225, 4
    %v248 = vsel %vm244, %v228, %v231
    %v249 = vsel %vm247, %v237, 2102212464
    %v250 = vsel %vm246, %v234, %v249
    %v251 = vsel %vm245, %v248, %v250
    %v252 = vsel %vm244, %v231, %v234
    %v253 = vsel %vm247, %v240, 920167782
    %v254 = vsel %vm246, %v237, %v253
    %v255 = vsel %vm245, %v252, %v254
    %v256 = vsel %vm244, %v234, %v237
    %v257 = vsel %vm247, %v243, 1326507024
    %v258 = vsel %vm246, %v240, %v257
    %v259 = vsel %vm245, %v256, %v258
    %v260 = vshll.u32 %v220, 8
    %v261 = vand.u32 %v260, 65535
    %v262 = vshrl.u32 %v260, 16
    %v263 = vand.u32 %v259, 65535
    %v264 = vshrl.u32 %v259, 16
    %v265 = vmul.u32 %v261, %v263
    %v266 = vmul.u32 %v261, %v264
    %v267 = vmul.u32 %v262, %v263
    %v268 = vmul.u32 %v262, %v264
    %v269 = vshll.u32 %v266, 16
    %v270 = vshrl.u32 %v266, 16
    %v271 = vshll.u32 %v267, 16
    %v272 = vshrl.u32 %v267, 16
    %vm273 = vc.u32 %v265, %v269
    %v274 = vsel %vm273, 1, 0
    %v275 = vadd.s32 %v265, %v269
    %v276 = vadd.s32 %v268, %v274
    %vm277 = vc.u32 %v275, %v271
    %v278 = vsel %vm277, 1, 0
    %v279 = vadd.s32 %v275, %v271
    %v280 = vadd.s32 %v276, %v278
    %v281 = vadd.s32 %v280, %v270
    %v282 = vadd.s32 %v281, %v272
    %v283 = vand.u32 %v260, 65535
    %v284 = vshrl.u32 %v260, 16
    %v285 = vand.u32 %v255, 65535
    %v286 = vshrl.u32 %v255, 16
    %v287 = vmul.u32 %v283, %v285
    %v288 = vmul.u32 %v283, %v286
    %v289 = vmul.u32 %v284, %v285
    %v290 = vmul.u32 %v284, %v286
    %v291 = vshll.u32 %v288, 16
    %v292 = vshrl.u32 %v288, 16
    %v293 = vshll.u32 %v289, 16
    %v294 = vshrl.u32 %v289, 16
    %vm295 = vc.u32 %v287, %v291
    %v296 = vsel %vm295, 1, 0
    %v297 = vadd.s32 %v287, %v291
    %v298 = vadd.s32 %v290, %v296
    %vm299 = vc.u32 %v297, %v293
    %v300 = vsel %vm299, 1, 0
    %v301 = vadd.s32 %v297, %v293
    %v302 = vadd.s32 %v298, %v300
    %v303 = vadd.s32 %v302, %v292
    %v304 = vadd.s32 %v303, %v294
    %v305 = vmul.u32 %v260, %v251
    %v306 = vadd.s32 %v282, %v301
    %vm307 = vc.u32 %v282, %v301
    %v308 = vadd.s32 %v304, 1
    %v309 = vsel %vm307, %v308, %v304
    %v310 = vadd.s32 %v305, %v309
    %v311 = vadd.s32 %v310, 536870912
    %v312 = vshrl.u32 %v311, 30
    %v313 = vshll.u32 %v312, 30
    %v314 = vsub.s32 %v310, %v313
    %vm315 = vcmp.lt.s32.totalorder %v314, 0
    %v316 = vsub.s32 0, %v314
    %v317 = vsel %vm315, %v316, %v314
    %v318 = vclz %v317
    %v319 = vsub.s32 %v318, 2
    %vm320 = vcmp.gt.s32.totalorder 0, %v319
    %v321 = vsel %vm320, 0, %v319
    %v322 = vsub.s32 32, %v321
    %v323 = vshll.u32 %v314, %v321
    %v324 = vshrl.u32 %v306, %v322
    %v325 = vor.u32 %v323, %v324
    %v326 = vsub.s32 4294967266, %v321
    %v327 = vadd.s32 %v326, 127
    %v328 = vshll.u32 %v327, 23
    %v329 = vor.u32 4788187, %v328
    %v330 = vand.u32 2147483647, %v329
    %v332 = vcvt.s32.f32 %v325
    %v333 = vmul.f32 %v332, %v330
    %v334 = vxor.u32 %v333, 2147483648
    %v335 = vsel %vm214, %v334, %v333
    %v336 = vsub.s32 4, %v312
    %v337 = vsel %vm214, %v336, %v312
    %v338 = vsel %vm213, %v211, %v335
    %v339 = vsel %vm213, 0, %v337
    %v340 = vmul.f32 %v338, %v338
    %v341 = vmul.f32 %v340, -0.001358992
    %v342 = vadd.f32 %v341, 0.041655596
    %v343 = vmul.f32 %v340, %v342
    %v344 = vadd.f32 %v343, -0.4999988
    %v345 = vmul.f32 %v340, %v344
    %v346 = vadd.f32 1.0, %v345
    %v347 = vmul.f32 %v338, %v338
    %v348 = vmul.f32 %v347, -0.00019511016
    %v349 = vadd.f32 %v348, 0.008332121
    %v350 = vmul.f32 %v347, %v349
    %v351 = vadd.f32 %v350, -0.16666654
    %v352 = vmul.f32 %v347, %v351
    %v353 = vadd.f32 %v352, 1.0
    %v354 = vmul.f32 %v353, %v338
    %vm355 = vweird.f32 %v211
    %v356 = vadd.s32 %v339, 3
    %v357 = vand.u32 %v356, 3
    %vm358 = vcmp.lt.s32.totalorder %v357, 2
    %vm359 = vcmp.eq.s32.totalorder %v357, 0
    %v360 = vxor.u32 %v354, 2147483648
    %v361 = vsel %vm359, %v346, %v360
    %vm362 = vcmp.eq.s32.totalorder %v357, 2
    %v363 = vxor.u32 %v346, 2147483648
    %v364 = vsel %vm362, %v363, %v354
    %v365 = vsel %vm358, %v361, %v364
    %v366 = vsel %vm355, nan, %v365
    %v367 = vmul.f32 %v366, 43758.547
    %vm368 = vcmp.lt.f32.partialorder %v367, 0.0
    %v369 = vceil.f32 %v367
    %v370 = vfloor.f32 %v367
    %v371 = vsel %vm368, %v369, %v370
    %v372 = vsub.f32 %v367, %v371
    %v373 = vadd.f32 %v35, 78.233
    %v374 = vmul.f32 %v373, 0.31847134
    %vm375 = vcmp.lt.f32.partialorder %v374, 0.0
    %v376 = vceil.f32 %v374
    %v377 = vfloor.f32 %v374
    %v378 = vsel %vm375, %v376, %v377
    %v379 = vmul.f32 %v378, 3.14
    %v380 = vsub.f32 %v373, %v379
    %v381 = vand.u32 2147483647, %v380
    %vm382 = vcmp.le.f32.partialorder %v381, 0.7853982
    %vm383 = vcmp.lt.s32.totalorder %v380, 0
    %v384 = vand.u32 %v380, 2139095040
    %v385 = vshrl.u32 %v384, 23
    %v386 = vsub.s32 %v385, 127
    %v387 = vand.u32 2147483647, %v380
    %v388 = vand.u32 %v387, 8388607
    %v389 = vor.u32 %v388, 8388608
    %v390 = vsub.s32 0, %v389
    %v391 = vadd.s32 %v386, 1
    %vm392 = vcmp.gt.s32.totalorder %v391, 0
    %v393 = vsel %vm392, %v391, 0
    %v394 = vshrl.u32 %v393, 5
    %v395 = vand.u32 %v393, 31
    %v396 = vsub.s32 32, %v395
    %v397 = vshrl.u32 683565275, %v396
    %v398 = vshll.u32 683565275, %v395
    %v399 = vshrl.u32 2475754826, %v396
    %v400 = vor.u32 %v398, %v399
    %v401 = vshll.u32 2475754826, %v395
    %v402 = vshrl.u32 2131351028, %v396
    %v403 = vor.u32 %v401, %v402
    %v404 = vshll.u32 2131351028, %v395
    %v405 = vshrl.u32 2102212464, %v396
    %v406 = vor.u32 %v404, %v405
    %v407 = vshll.u32 2102212464, %v395
    %v408 = vshrl.u32 920167782, %v396
    %v409 = vor.u32 %v407, %v408
    %v410 = vshll.u32 920167782, %v395
    %v411 = vshrl.u32 1326507024, %v396
    %v412 = vor.u32 %v410, %v411
    %vm413 = vcmp.lt.s32.totalorder %v394, 1
    %vm414 = vcmp.lt.s32.totalorder %v394, 2
    %vm415 = vcmp.lt.s32.totalorder %v394, 3
    %vm416 = vcmp.lt.s32.totalorder %v394, 4
    %v417 = vsel %vm413, %v397, %v400
    %v418 = vsel %vm416, %v406, 2102212464
    %v419 = vsel %vm415, %v403, %v418
    %v420 = vsel %vm414, %v417, %v419
    %v421 = vsel %vm413, %v400, %v403
    %v422 = vsel %vm416, %v409, 920167782
    %v423 = vsel %vm415, %v406, %v422
    %v424 = vsel %vm414, %v421, %v423
    %v425 = vsel %vm413, %v403, %v406
    %v426 = vsel %vm416, %v412, 1326507024
    %v427 = vsel %vm415, %v409, %v426
    %v428 = vsel %vm414, %v425, %v427
    %v429 = vshll.u32 %v389, 8
    %v430 = vand.u32 %v429, 65535
    %v431 = vshrl.u32 %v429, 16
    %v432 = vand.u32 %v428, 65535
    %v433 = vshrl.u32 %v428, 16
    %v434 = vmul.u32 %v430, %v432
    %v435 = vmul.u32 %v430, %v433
    %v436 = vmul.u32 %v431, %v432
    %v437 = vmul.u32 %v431, %v433
    %v438 = vshll.u32 %v435, 16
    %v439 = vshrl.u32 %v435, 16
    %v440 = vshll.u32 %v436, 16
    %v441 = vshrl.u32 %v436, 16
    %vm442 = vc.u32 %v434, %v438
    %v443 = vsel %vm442, 1, 0
    %v444 = vadd.s32 %v434, %v438
    %v445 = vadd.s32 %v437, %v443
    %vm446 = vc.u32 %v444, %v440
    %v447 = vsel %vm446, 1, 0
    %v448 = vadd.s32 %v444, %v440
    %v449 = vadd.s32 %v445, %v447
    %v450 = vadd.s32 %v449, %v439
    %v451 = vadd.s32 %v450, %v441
    %v452 = vand.u32 %v429, 65535
    %v453 = vshrl.u32 %v429, 16
    %v454 = vand.u32 %v424, 65535
    %v455 = vshrl.u32 %v424, 16
    %v456 = vmul.u32 %v452, %v454
    %v457 = vmul.u32 %v452, %v455
    %v458 = vmul.u32 %v453, %v454
    %v459 = vmul.u32 %v453, %v455
    %v460 = vshll.u32 %v457, 16
    %v461 = vshrl.u32 %v457, 16
    %v462 = vshll.u32 %v458, 16
    %v463 = vshrl.u32 %v458, 16
    %vm464 = vc.u32 %v456, %v460
    %v465 = vsel %vm464, 1, 0
    %v466 = vadd.s32 %v456, %v460
    %v467 = vadd.s32 %v459, %v465
    %vm468 = vc.u32 %v466, %v462
    %v469 = vsel %vm468, 1, 0
    %v470 = vadd.s32 %v466, %v462
    %v471 = vadd.s32 %v467, %v469
    %v472 = vadd.s32 %v471, %v461
    %v473 = vadd.s32 %v472, %v463
    %v474 = vmul.u32 %v429, %v420
    %v475 = vadd.s32 %v451, %v470
    %vm476 = vc.u32 %v451, %v470
    %v477 = vadd.s32 %v473, 1
    %v478 = vsel %vm476, %v477, %v473
    %v479 = vadd.s32 %v474, %v478
    %v480 = vadd.s32 %v479, 536870912
    %v481 = vshrl.u32 %v480, 30
    %v482 = vshll.u32 %v481, 30
    %v483 = vsub.s32 %v479, %v482
    %vm484 = vcmp.lt.s32.totalorder %v483, 0
    %v485 = vsub.s32 0, %v483
    %v486 = vsel %vm484, %v485, %v483
    %v487 = vclz %v486
    %v488 = vsub.s32 %v487, 2
    %vm489 = vcmp.gt.s32.totalorder 0, %v488
    %v490 = vsel %vm489, 0, %v488
    %v491 = vsub.s32 32, %v490
    %v492 = vshll.u32 %v483, %v490
    %v493 = vshrl.u32 %v475, %v491
    %v494 = vor.u32 %v492, %v493
    %v495 = vsub.s32 4294967266, %v490
    %v496 = vadd.s32 %v495, 127
    %v497 = vshll.u32 %v496, 23
    %v498 = vor.u32 4788187, %v497
    %v499 = vand.u32 2147483647, %v498
    %v501 = vcvt.s32.f32 %v494
    %v502 = vmul.f32 %v501, %v499
    %v503 = vxor.u32 %v502, 2147483648
    %v504 = vsel %vm383, %v503, %v502
    %v505 = vsub.s32 4, %v481
    %v506 = vsel %vm383, %v505, %v481
    %v507 = vsel %vm382, %v380, %v504
    %v508 = vsel %vm382, 0, %v506
    %v509 = vmul.f32 %v507, %v507
    %v510 = vmul.f32 %v509, -0.001358992
    %v511 = vadd.f32 %v510, 0.041655596
    %v512 = vmul.f32 %v509, %v511
    %v513 = vadd.f32 %v512, -0.4999988
    %v514 = vmul.f32 %v509, %v513
    %v515 = vadd.f32 1.0, %v514
    %v516 = vmul.f32 %v507, %v507
    %v517 = vmul.f32 %v516, -0.00019511016
    %v518 = vadd.f32 %v517, 0.008332121
    %v519 = vmul.f32 %v516, %v518
    %v520 = vadd.f32 %v519, -0.16666654
    %v521 = vmul.f32 %v516, %v520
    %v522 = vadd.f32 %v521, 1.0
    %v523 = vmul.f32 %v522, %v507
    %vm524 = vweird.f32 %v380
    %v525 = vadd.s32 %v508, 3
    %v526 = vand.u32 %v525, 3
    %vm527 = vcmp.lt.s32.totalorder %v526, 2
    %vm528 = vcmp.eq.s32.totalorder %v526, 0
    %v529 = vxor.u32 %v523, 2147483648
    %v530 = vsel %vm528, %v515, %v529
    %vm531 = vcmp.eq.s32.totalorder %v526, 2
    %v532 = vxor.u32 %v515, 2147483648
    %v533 = vsel %vm531, %v532, %v523
    %v534 = vsel %vm527, %v530, %v533
    %v535 = vsel %vm524, nan, %v534
    %v536 = vmul.f32 %v535, 43758.547
    %vm537 = vcmp.lt.f32.partialorder %v536, 0.0
    %v538 = vceil.f32 %v536
    %v539 = vfloor.f32 %v536
    %v540 = vsel %vm537, %v538, %v539
    %v541 = vsub.f32 %v536, %v540
    %v542 = vadd.f32 %v35, 91.2228
    %v543 = vmul.f32 %v542, 0.31847134
    %vm544 = vcmp.lt.f32.partialorder %v543, 0.0
    %v545 = vceil.f32 %v543
    %v546 = vfloor.f32 %v543
    %v547 = vsel %vm544, %v545, %v546
    %v548 = vmul.f32 %v547, 3.14
    %v549 = vsub.f32 %v542, %v548
    %v550 = vand.u32 2147483647, %v549
    %vm551 = vcmp.le.f32.partialorder %v550, 0.7853982
    %vm552 = vcmp.lt.s32.totalorder %v549, 0
    %v553 = vand.u32 %v549, 2139095040
    %v554 = vshrl.u32 %v553, 23
    %v555 = vsub.s32 %v554, 127
    %v556 = vand.u32 2147483647, %v549
    %v557 = vand.u32 %v556, 8388607
    %v558 = vor.u32 %v557, 8388608
    %v559 = vsub.s32 0, %v558
    %v560 = vadd.s32 %v555, 1
    %vm561 = vcmp.gt.s32.totalorder %v560, 0
    %v562 = vsel %vm561, %v560, 0
    %v563 = vshrl.u32 %v562, 5
    %v564 = vand.u32 %v562, 31
    %v565 = vsub.s32 32, %v564
    %v566 = vshrl.u32 683565275, %v565
    %v567 = vshll.u32 683565275, %v564
    %v568 = vshrl.u32 2475754826, %v565
    %v569 = vor.u32 %v567, %v568
    %v570 = vshll.u32 2475754826, %v564
    %v571 = vshrl.u32 2131351028, %v565
    %v572 = vor.u32 %v570, %v571
    %v573 = vshll.u32 2131351028, %v564
    %v574 = vshrl.u32 2102212464, %v565
    %v575 = vor.u32 %v573, %v574
    %v576 = vshll.u32 2102212464, %v564
    %v577 = vshrl.u32 920167782, %v565
    %v578 = vor.u32 %v576, %v577
    %v579 = vshll.u32 920167782, %v564
    %v580 = vshrl.u32 1326507024, %v565
    %v581 = vor.u32 %v579, %v580
    %vm582 = vcmp.lt.s32.totalorder %v563, 1
    %vm583 = vcmp.lt.s32.totalorder %v563, 2
    %vm584 = vcmp.lt.s32.totalorder %v563, 3
    %vm585 = vcmp.lt.s32.totalorder %v563, 4
    %v586 = vsel %vm582, %v566, %v569
    %v587 = vsel %vm585, %v575, 2102212464
    %v588 = vsel %vm584, %v572, %v587
    %v589 = vsel %vm583, %v586, %v588
    %v590 = vsel %vm582, %v569, %v572
    %v591 = vsel %vm585, %v578, 920167782
    %v592 = vsel %vm584, %v575, %v591
    %v593 = vsel %vm583, %v590, %v592
    %v594 = vsel %vm582, %v572, %v575
    %v595 = vsel %vm585, %v581, 1326507024
    %v596 = vsel %vm584, %v578, %v595
    %v597 = vsel %vm583, %v594, %v596
    %v598 = vshll.u32 %v558, 8
    %v599 = vand.u32 %v598, 65535
    %v600 = vshrl.u32 %v598, 16
    %v601 = vand.u32 %v597, 65535
    %v602 = vshrl.u32 %v597, 16
    %v603 = vmul.u32 %v599, %v601
    %v604 = vmul.u32 %v599, %v602
    %v605 = vmul.u32 %v600, %v601
    %v606 = vmul.u32 %v600, %v602
    %v607 = vshll.u32 %v604, 16
    %v608 = vshrl.u32 %v604, 16
    %v609 = vshll.u32 %v605, 16
    %v610 = vshrl.u32 %v605, 16
    %vm611 = vc.u32 %v603, %v607
    %v612 = vsel %vm611, 1, 0
    %v613 = vadd.s32 %v603, %v607
    %v614 = vadd.s32 %v606, %v612
    %vm615 = vc.u32 %v613, %v609
    %v616 = vsel %vm615, 1, 0
    %v617 = vadd.s32 %v613, %v609
    %v618 = vadd.s32 %v614, %v616
    %v619 = vadd.s32 %v618, %v608
    %v620 = vadd.s32 %v619, %v610
    %v621 = vand.u32 %v598, 65535
    %v622 = vshrl.u32 %v598, 16
    %v623 = vand.u32 %v593, 65535
    %v624 = vshrl.u32 %v593, 16
    %v625 = vmul.u32 %v621, %v623
    %v626 = vmul.u32 %v621, %v624
    %v627 = vmul.u32 %v622, %v623
    %v628 = vmul.u32 %v622, %v624
    %v629 = vshll.u32 %v626, 16
    %v630 = vshrl.u32 %v626, 16
    %v631 = vshll.u32 %v627, 16
    %v632 = vshrl.u32 %v627, 16
    %vm633 = vc.u32 %v625, %v629
    %v634 = vsel %vm633, 1, 0
    %v635 = vadd.s32 %v625, %v629
    %v636 = vadd.s32 %v628, %v634
    %vm637 = vc.u32 %v635, %v631
    %v638 = vsel %vm637, 1, 0
    %v639 = vadd.s32 %v635, %v631
    %v640 = vadd.s32 %v636, %v638
    %v641 = vadd.s32 %v640, %v630
    %v642 = vadd.s32 %v641, %v632
    %v643 = vmul.u32 %v598, %v589
    %v644 = vadd.s32 %v620, %v639
    %vm645 = vc.u32 %v620, %v639
    %v646 = vadd.s32 %v642, 1
    %v647 = vsel %vm645, %v646, %v642
    %v648 = vadd.s32 %v643, %v647
    %v649 = vadd.s32 %v648, 536870912
    %v650 = vshrl.u32 %v649, 30
    %v651 = vshll.u32 %v650, 30
    %v652 = vsub.s32 %v648, %v651
    %vm653 = vcmp.lt.s32.totalorder %v652, 0
    %v654 = vsub.s32 0, %v652
    %v655 = vsel %vm653, %v654, %v652
    %v656 = vclz %v655
    %v657 = vsub.s32 %v656, 2
    %vm658 = vcmp.gt.s32.totalorder 0, %v657
    %v659 = vsel %vm658, 0, %v657
    %v660 = vsub.s32 32, %v659
    %v661 = vshll.u32 %v652, %v659
    %v662 = vshrl.u32 %v644, %v660
    %v663 = vor.u32 %v661, %v662
    %v664 = vsub.s32 4294967266, %v659
    %v665 = vadd.s32 %v664, 127
    %v666 = vshll.u32 %v665, 23
    %v667 = vor.u32 4788187, %v666
    %v668 = vand.u32 2147483647, %v667
    %v670 = vcvt.s32.f32 %v663
    %v671 = vmul.f32 %v670, %v668
    %v672 = vxor.u32 %v671, 2147483648
    %v673 = vsel %vm552, %v672, %v671
    %v674 = vsub.s32 4, %v650
    %v675 = vsel %vm552, %v674, %v650
    %v676 = vsel %vm551, %v549, %v673
    %v677 = vsel %vm551, 0, %v675
    %v678 = vmul.f32 %v676, %v676
    %v679 = vmul.f32 %v678, -0.001358992
    %v680 = vadd.f32 %v679, 0.041655596
    %v681 = vmul.f32 %v678, %v680
    %v682 = vadd.f32 %v681, -0.4999988
    %v683 = vmul.f32 %v678, %v682
    %v684 = vadd.f32 1.0, %v683
    %v685 = vmul.f32 %v676, %v676
    %v686 = vmul.f32 %v685, -0.00019511016
    %v687 = vadd.f32 %v686, 0.008332121
    %v688 = vmul.f32 %v685, %v687
    %v689 = vadd.f32 %v688, -0.16666654
    %v690 = vmul.f32 %v685, %v689
    %v691 = vadd.f32 %v690, 1.0
    %v692 = vmul.f32 %v691, %v676
    %vm693 = vweird.f32 %v549
    %v694 = vadd.s32 %v677, 3
    %v695 = vand.u32 %v694, 3
    %vm696 = vcmp.lt.s32.totalorder %v695, 2
    %vm697 = vcmp.eq.s32.totalorder %v695, 0
    %v698 = vxor.u32 %v692, 2147483648
    %v699 = vsel %vm697, %v684, %v698
    %vm700 = vcmp.eq.s32.totalorder %v695, 2
    %v701 = vxor.u32 %v684, 2147483648
    %v702 = vsel %vm700, %v701, %v692
    %v703 = vsel %vm696, %v699, %v702
    %v704 = vsel %vm693, nan, %v703
    %v705 = vmul.f32 %v704, 43758.547
    %vm706 = vcmp.lt.f32.partialorder %v705, 0.0
    %v707 = vceil.f32 %v705
    %v708 = vfloor.f32 %v705
    %v709 = vsel %vm706, %v707, %v708
    %v710 = vsub.f32 %v705, %v709
    %v711 = vsub.f32 %v372, %v203
    %v712 = vmul.f32 %v31, %v711
    %v713 = vadd.f32 %v203, %v712
    %v714 = vsub.f32 %v710, %v541
    %v715 = vmul.f32 %v31, %v714
    %v716 = vadd.f32 %v541, %v715
    %v717 = vsub.f32 %v716, %v713
    %v718 = vmul.f32 %v32, %v717
    %v719 = vadd.f32 %v713, %v718
    %vm720 = vcmp.ge.f32.partialorder %v719, 0.5
    %vm721 = vcmp.lt.f32.partialorder %v21, 1.0
    %vm722 = vmor %vm720, %vm721
    %vm723 = vcmp.lt.f32.partialorder %v22, 1.0
    %vm724 = vmor %vm722, %vm723
    %vm725 = vcmp.ge.f32.partialorder %v21, 15.0
    %vm726 = vmor %vm724, %vm725
    %vm727 = vcmp.ge.f32.partialorder %v22, 15.0
    %vm728 = vmor %vm726, %vm727
    %v729 = vsel %vm728, 1.0, 0.0
    %v730 = vmul.f32 %v26, 12.9898
    %v731 = vmul.f32 %v28, 78.233
    %v732 = vadd.f32 %v730, %v731
    %v733 = vmul.f32 %v732, 0.31847134
    %vm734 = vcmp.lt.f32.partialorder %v733, 0.0
    %v735 = vceil.f32 %v733
    %v736 = vfloor.f32 %v733
    %v737 = vsel %vm734, %v735, %v736
    %v738 = vmul.f32 %v737, 3.14
    %v739 = vsub.f32 %v732, %v738
    %v740 = vand.u32 2147483647, %v739
    %vm741 = vcmp.le.f32.partialorder %v740, 0.7853982
    %vm742 = vcmp.lt.s32.totalorder %v739, 0
    %v743 = vand.u32 %v739, 2139095040
    %v744 = vshrl.u32 %v743, 23
    %v745 = vsub.s32 %v744, 127
    %v746 = vand.u32 2147483647, %v739
    %v747 = vand.u32 %v746, 8388607
    %v748 = vor.u32 %v747, 8388608
    %v749 = vsub.s32 0, %v748
    %v750 = vadd.s32 %v745, 1
    %vm751 = vcmp.gt.s32.totalorder %v750, 0
    %v752 = vsel %vm751, %v750, 0
    %v753 = vshrl.u32 %v752, 5
    %v754 = vand.u32 %v752, 31
    %v755 = vsub.s32 32, %v754
    %v756 = vshrl.u32 683565275, %v755
    %v757 = vshll.u32 683565275, %v754
    %v758 = vshrl.u32 2475754826, %v755
    %v759 = vor.u32 %v757, %v758
    %v760 = vshll.u32 2475754826, %v754
    %v761 = vshrl.u32 2131351028, %v755
    %v762 = vor.u32 %v760, %v761
    %v763 = vshll.u32 2131351028, %v754
    %v764 = vshrl.u32 2102212464, %v755
    %v765 = vor.u32 %v763, %v764
    %v766 = vshll.u32 2102212464, %v754
    %v767 = vshrl.u32 920167782, %v755
    %v768 = vor.u32 %v766, %v767
    %v769 = vshll.u32 920167782, %v754
    %v770 = vshrl.u32 1326507024, %v755
    %v771 = vor.u32 %v769, %v770
    %vm772 = vcmp.lt.s32.totalorder %v753, 1
    %vm773 = vcmp.lt.s32.totalorder %v753, 2
    %vm774 = vcmp.lt.s32.totalorder %v753, 3
    %vm775 = vcmp.lt.s32.totalorder %v753, 4
    %v776 = vsel %vm772, %v756, %v759
    %v777 = vsel %vm775, %v765, 2102212464
    %v778 = vsel %vm774, %v762, %v777
    %v779 = vsel %vm773, %v776, %v778
    %v780 = vsel %vm772, %v759, %v762
    %v781 = vsel %vm775, %v768, 920167782
    %v782 = vsel %vm774, %v765, %v781
    %v783 = vsel %vm773, %v780, %v782
    %v784 = vsel %vm772, %v762, %v765
    %v785 = vsel %vm775, %v771, 1326507024
    %v786 = vsel %vm774, %v768, %v785
    %v787 = vsel %vm773, %v784, %v786
    %v788 = vshll.u32 %v748, 8
    %v789 = vand.u32 %v788, 65535
    %v790 = vshrl.u32 %v788, 16
    %v791 = vand.u32 %v787, 65535
    %v792 = vshrl.u32 %v787, 16
    %v793 = vmul.u32 %v789, %v791
    %v794 = vmul.u32 %v789, %v792
    %v795 = vmul.u32 %v790, %v791
    %v796 = vmul.u32 %v790, %v792
    %v797 = vshll.u32 %v794, 16
    %v798 = vshrl.u32 %v794, 16
    %v799 = vshll.u32 %v795, 16
    %v800 = vshrl.u32 %v795, 16
    %vm801 = vc.u32 %v793, %v797
    %v802 = vsel %vm801, 1, 0
    %v803 = vadd.s32 %v793, %v797
    %v804 = vadd.s32 %v796, %v802
    %vm805 = vc.u32 %v803, %v799
    %v806 = vsel %vm805, 1, 0
    %v807 = vadd.s32 %v803, %v799
    %v808 = vadd.s32 %v804, %v806
    %v809 = vadd.s32 %v808, %v798
    %v810 = vadd.s32 %v809, %v800
    %v811 = vand.u32 %v788, 65535
    %v812 = vshrl.u32 %v788, 16
    %v813 = vand.u32 %v783, 65535
    %v814 = vshrl.u32 %v783, 16
    %v815 = vmul.u32 %v811, %v813
    %v816 = vmul.u32 %v811, %v814
    %v817 = vmul.u32 %v812, %v813
    %v818 = vmul.u32 %v812, %v814
    %v819 = vshll.u32 %v816, 16
    %v820 = vshrl.u32 %v816, 16
    %v821 = vshll.u32 %v817, 16
    %v822 = vshrl.u32 %v817, 16
    %vm823 = vc.u32 %v815, %v819
    %v824 = vsel %vm823, 1, 0
    %v825 = vadd.s32 %v815, %v819
    %v826 = vadd.s32 %v818, %v824
    %vm827 = vc.u32 %v825, %v821
    %v828 = vsel %vm827, 1, 0
    %v829 = vadd.s32 %v825, %v821
    %v830 = vadd.s32 %v826, %v828
    %v831 = vadd.s32 %v830, %v820
    %v832 = vadd.s32 %v831, %v822
    %v833 = vmul.u32 %v788, %v779
    %v834 = vadd.s32 %v810, %v829
    %vm835 = vc.u32 %v810, %v829
    %v836 = vadd.s32 %v832, 1
    %v837 = vsel %vm835, %v836, %v832
    %v838 = vadd.s32 %v833, %v837
    %v839 = vadd.s32 %v838, 536870912
    %v840 = vshrl.u32 %v839, 30
    %v841 = vshll.u32 %v840, 30
    %v842 = vsub.s32 %v838, %v841
    %vm843 = vcmp.lt.s32.totalorder %v842, 0
    %v844 = vsub.s32 0, %v842
    %v845 = vsel %vm843, %v844, %v842
    %v846 = vclz %v845
    %v847 = vsub.s32 %v846, 2
    %vm848 = vcmp.gt.s32.totalorder 0, %v847
    %v849 = vsel %vm848, 0, %v847
    %v850 = vsub.s32 32, %v849
    %v851 = vshll.u32 %v842, %v849
    %v852 = vshrl.u32 %v834, %v850
    %v853 = vor.u32 %v851, %v852
    %v854 = vsub.s32 4294967266, %v849
    %v855 = vadd.s32 %v854, 127
    %v856 = vshll.u32 %v855, 23
    %v857 = vor.u32 4788187, %v856
    %v858 = vand.u32 2147483647, %v857
    %v860 = vcvt.s32.f32 %v853
    %v861 = vmul.f32 %v860, %v858
    %v862 = vxor.u32 %v861, 2147483648
    %v863 = vsel %vm742, %v862, %v861
    %v864 = vsub.s32 4, %v840
    %v865 = vsel %vm742, %v864, %v840
    %v866 = vsel %vm741, %v739, %v863
    %v867 = vsel %vm741, 0, %v865
    %v868 = vmul.f32 %v866, %v866
    %v869 = vmul.f32 %v868, -0.001358992
    %v870 = vadd.f32 %v869, 0.041655596
    %v871 = vmul.f32 %v868, %v870
    %v872 = vadd.f32 %v871, -0.4999988
    %v873 = vmul.f32 %v868, %v872
    %v874 = vadd.f32 1.0, %v873
    %v875 = vmul.f32 %v866, %v866
    %v876 = vmul.f32 %v875, -0.00019511016
    %v877 = vadd.f32 %v876, 0.008332121
    %v878 = vmul.f32 %v875, %v877
    %v879 = vadd.f32 %v878, -0.16666654
    %v880 = vmul.f32 %v875, %v879
    %v881 = vadd.f32 %v880, 1.0
    %v882 = vmul.f32 %v881, %v866
    %vm883 = vweird.f32 %v739
    %v884 = vadd.s32 %v867, 3
    %v885 = vand.u32 %v884, 3
    %vm886 = vcmp.lt.s32.totalorder %v885, 2
    %vm887 = vcmp.eq.s32.totalorder %v885, 0
    %v888 = vxor.u32 %v882, 2147483648
    %v889 = vsel %vm887, %v874, %v888
    %vm890 = vcmp.eq.s32.totalorder %v885, 2
    %v891 = vxor.u32 %v874, 2147483648
    %v892 = vsel %vm890, %v891, %v882
    %v893 = vsel %vm886, %v889, %v892
    %v894 = vsel %vm883, nan, %v893
    %v895 = vmul.f32 %v894, 43758.547
    %vm896 = vcmp.lt.f32.partialorder %v895, 0.0
    %v897 = vceil.f32 %v895
    %v898 = vfloor.f32 %v895
    %v899 = vsel %vm896, %v897, %v898
    %v900 = vsub.f32 %v895, %v899
    %v901 = vmul.f32 %v900, 2.0
    %v902 = vadd.f32 %v729, %v901
    %903 = vst [vmem:[#allocation3] sm:$0xff] %v902
    // Predicated region
    $region6: #{tpu_custom_call.1} parent=1 // pred_check
      _
    $region7: #{tpu_custom_call.1} parent=1 // pred_check_branch
      %905 = sbr.rel (0) target = $region9
    $region8: #{tpu_custom_call.1} parent=1 // pred_region
      %907 = vsyncadd [#allocation4], 0
      %s909 = sshll.u32 [#allocation3], 4
      %s910 = int_to_ptr.vmem [resolvable:$true] %s909
      %s911 = sshll.u32 %s1, 4
      %s912 = int_to_ptr.hbm [resolvable:$true] %s911
      %914 = dma.vmem_to_hbm [thread:$0]  %s910, 128, %s912, [#allocation4]
    $region9: #{tpu_custom_call.1} parent=1 // pred_fallthru
      _
    // Predicated region
    $region10: #{tpu_custom_call.1} parent=1 // pred_check
      _
    $region11: #{tpu_custom_call.1} parent=1 // pred_check_branch
      %916 = sbr.rel (0) target = $region13
    $region12: #{tpu_custom_call.1} parent=1 // pred_region
      %918 = dma.done [#allocation4], 128
    $region13: #{tpu_custom_call.1} parent=1 // pred_fallthru
      _
    %919 = vsyncpa [#allocation4], 1

</llo_original>
